<compile_context>
chip_gen: v5e
topology: v5e:2x2
jax: 0.10.0
libtpu: 0.0.40
codegen_flags: <defaults>
</compile_context>

<pallas_src>
import jax
import jax.numpy as jnp
from jax.experimental import pallas as pl
from jax.experimental.pallas import tpu as pltpu

LANE = 128


def _round_up(n, m):
    return ((n + m - 1) // m) * m


def _mlp_kernel(x_ref, w1_ref, b1_ref, w2_ref, b2_ref, w3_ref, b3_ref, o_ref):
    # Cast the streamed f32 batch tile to bf16 in-kernel (free VPU work).
    x = x_ref[...].astype(w1_ref.dtype)
    # Layer 1: bf16 matmul, f32 accumulation; bias + ReLU in f32.
    h1 = jnp.dot(x, w1_ref[...], preferred_element_type=jnp.float32)
    h1 = jnp.maximum(h1 + b1_ref[...], 0.0)
    # Layer 2
    h2 = jnp.dot(h1.astype(w2_ref.dtype), w2_ref[...],
                 preferred_element_type=jnp.float32)
    h2 = jnp.maximum(h2 + b2_ref[...], 0.0)
    # Output layer: matmul at padded width, then narrow store (only the real logits).
    out = jnp.dot(h2.astype(w3_ref.dtype), w3_ref[...],
                  preferred_element_type=jnp.float32)
    out_dim = o_ref.shape[-1]
    o_ref[...] = (out[:, :out_dim] + b3_ref[...]).astype(o_ref.dtype)


def prepare_params(params, *, compute_dtype=jnp.bfloat16):
    """One-time prep: transpose-free (weights already (in,out)), pad hidden/out dims to
    128 lanes, cast weights to bf16, biases to f32 rows. Call once, reuse per forward."""
    w1, b1 = params["w1"], params["b1"]
    w2, b2 = params["w2"], params["b2"]
    w3, b3 = params["w3"], params["b3"]
    in_dim, h1 = w1.shape
    h2, out_dim = w2.shape[1], w3.shape[1]
    h1_p = _round_up(h1, LANE)
    h2_p = _round_up(h2, LANE)
    out_p = _round_up(out_dim, LANE)

    def pad2(a, rows, cols):
        return jnp.pad(a, ((0, rows - a.shape[0]), (0, cols - a.shape[1])))

    return {
        "w1": pad2(w1, in_dim, h1_p).astype(compute_dtype),
        "b1": pad2(b1.reshape(1, -1), 1, h1_p).astype(jnp.float32),
        "w2": pad2(w2, h1_p, h2_p).astype(compute_dtype),
        "b2": pad2(b2.reshape(1, -1), 1, h2_p).astype(jnp.float32),
        "w3": pad2(w3, h2_p, out_p).astype(compute_dtype),
        "b3": b3.reshape(1, -1).astype(jnp.float32),   # kept narrow (1, out_dim)
    }


def domain_classifier_forward(x, prepared, *, tile_b=1024):
    """x: (B, input_size) float32; prepared: output of prepare_params().
    Returns (B, 2) float32 logits."""
    B, in_dim = x.shape
    w1, b1 = prepared["w1"], prepared["b1"]
    w2, b2 = prepared["w2"], prepared["b2"]
    w3, b3 = prepared["w3"], prepared["b3"]
    h1_p, h2_p, out_p = w1.shape[1], w2.shape[1], w3.shape[1]
    out_dim = b3.shape[1]

    # Multiple of 16 (bf16 packs 16 sublanes / vreg); no bigger than the batch itself.
    tile_b = max(16, _round_up(min(tile_b, _round_up(B, 16)), 16))
    grid = (pl.cdiv(B, tile_b),)   # ragged last tile is masked on store

    # Weights/biases: constant index_map -> VMEM-resident across all grid steps.
    resident = lambda shape: pl.BlockSpec(shape, lambda i: (0, 0))

    flops = 2 * B * (in_dim * h1_p + h1_p * h2_p + h2_p * out_p)
    bytes_accessed = (
        x.size * x.dtype.itemsize
        + sum(a.size * a.dtype.itemsize for a in (w1, b1, w2, b2, w3, b3))
        + B * out_dim * 4
    )

    return pl.pallas_call(
        _mlp_kernel,
        out_shape=jax.ShapeDtypeStruct((B, out_dim), jnp.float32),
        grid=grid,
        in_specs=[
            pl.BlockSpec((tile_b, in_dim), lambda i: (i, 0)),  # streamed batch tiles
            resident(w1.shape), resident(b1.shape),
            resident(w2.shape), resident(b2.shape),
            resident(w3.shape), resident(b3.shape),
        ],
        out_specs=pl.BlockSpec((tile_b, out_dim), lambda i: (i, 0)),  # narrow output
        compiler_params=pltpu.CompilerParams(
            dimension_semantics=("parallel",),     # shard batch tiles across TCs
            vmem_limit_bytes=32 * 1024 * 1024,
        ),
        cost_estimate=pl.CostEstimate(
            flops=flops, transcendentals=0, bytes_accessed=bytes_accessed),
    )(x, w1, b1, w2, b2, w3, b3)


def init_params(key, input_size, h1, h2, out=2):
    """PyTorch nn.Linear default init (uniform +/- 1/sqrt(fan_in)).
    Weights stored already transposed to (in, out); biases as (out,)."""
    ks = jax.random.split(key, 6)

    def lin(kw, kb, fan_in, fan_out):
        bound = 1.0 / jnp.sqrt(fan_in)
        w = jax.random.uniform(kw, (fan_in, fan_out), jnp.float32, -bound, bound)
        b = jax.random.uniform(kb, (fan_out,), jnp.float32, -bound, bound)
        return w, b

    w1, b1 = lin(ks[0], ks[1], input_size, h1)
    w2, b2 = lin(ks[2], ks[3], h1, h2)
    w3, b3 = lin(ks[4], ks[5], h2, out)
    return {"w1": w1, "b1": b1, "w2": w2, "b2": b2, "w3": w3, "b3": b3}


def _reference(x, p, compute_dtype=jnp.bfloat16):
    """Same math as the kernel (bf16 matmul inputs, f32 accumulation/elementwise).
    Accuracy target is bf16-matmul / f32-accumulate, not full f32 end-to-end."""
    xc = x.astype(compute_dtype)
    h1 = jnp.dot(xc, p["w1"].astype(compute_dtype),
                 preferred_element_type=jnp.float32) + p["b1"]
    h1 = jnp.maximum(h1, 0.0)
    h2 = jnp.dot(h1.astype(compute_dtype), p["w2"].astype(compute_dtype),
                 preferred_element_type=jnp.float32) + p["b2"]
    h2 = jnp.maximum(h2, 0.0)
    return jnp.dot(h2.astype(compute_dtype), p["w3"].astype(compute_dtype),
                   preferred_element_type=jnp.float32) + p["b3"]


if __name__ == "__main__":
    key = jax.random.PRNGKey(0)
    k_in, k_params = jax.random.split(key)

    # Multi-tile problem with a ragged last tile: cdiv(200, 64) = 4 grid steps.
    batch, input_size, hidden1, hidden2 = 200, 32, 64, 32
    x = jax.random.normal(k_in, (batch, input_size), dtype=jnp.float32)
    params = init_params(k_params, input_size, hidden1, hidden2)
    prepared = prepare_params(params)   # one-time pad + bf16 cast, outside forward

    out = domain_classifier_forward(x, prepared, tile_b=64)
    out = jax.block_until_ready(out)

    ref = _reference(x, params)
    assert out.shape == (batch, 2), out.shape
    assert bool(jnp.all(jnp.isfinite(out))), "non-finite logits"
    assert jnp.allclose(out, ref, atol=1e-2, rtol=1e-2), "mismatch vs reference"

    print("KERNEL_OK")
</pallas_src>

<mosaic_0001>
module attributes {stable_mosaic.version = 11 : i64} {
  func.func @_mlp_kernel(%arg0: i32, %arg1: memref<64x32xf32, #tpu.memory_space<vmem>>, %arg2: memref<32x128xbf16, #tpu.memory_space<vmem>>, %arg3: memref<1x128xf32, #tpu.memory_space<vmem>>, %arg4: memref<128x128xbf16, #tpu.memory_space<vmem>>, %arg5: memref<1x128xf32, #tpu.memory_space<vmem>>, %arg6: memref<128x128xbf16, #tpu.memory_space<vmem>>, %arg7: memref<1x2xf32, #tpu.memory_space<vmem>>, %arg8: memref<64x2xf32, #tpu.memory_space<vmem>>) attributes {dimension_semantics = [#tpu.dimension_semantics<parallel>], iteration_bounds = array<i64: 4>, scalar_prefetch = 0 : i64, scratch_operands = 0 : i64, tpu.core_type = #tpu.core_type<tc>, window_params = [{transform_indices = @transform_0, window_bounds = array<i64: 64, 32>}, {pipeline_mode = #tpu.pipeline_mode<synchronous>, transform_indices = @transform_1, window_bounds = array<i64: 32, 128>}, {pipeline_mode = #tpu.pipeline_mode<synchronous>, transform_indices = @transform_2, window_bounds = array<i64: 1, 128>}, {pipeline_mode = #tpu.pipeline_mode<synchronous>, transform_indices = @transform_3, window_bounds = array<i64: 128, 128>}, {pipeline_mode = #tpu.pipeline_mode<synchronous>, transform_indices = @transform_4, window_bounds = array<i64: 1, 128>}, {pipeline_mode = #tpu.pipeline_mode<synchronous>, transform_indices = @transform_5, window_bounds = array<i64: 128, 128>}, {pipeline_mode = #tpu.pipeline_mode<synchronous>, transform_indices = @transform_6, window_bounds = array<i64: 1, 2>}, {transform_indices = @transform_7, window_bounds = array<i64: 64, 2>}]} {
    %c0 = arith.constant 0 : index
    %c0_0 = arith.constant 0 : index
    %0 = vector.load %arg1[%c0, %c0_0] : memref<64x32xf32, #tpu.memory_space<vmem>>, vector<64x32xf32>
    %1 = arith.truncf %0 : vector<64x32xf32> to vector<64x32xbf16>
    %c0_1 = arith.constant 0 : index
    %c0_2 = arith.constant 0 : index
    %2 = vector.load %arg2[%c0_1, %c0_2] : memref<32x128xbf16, #tpu.memory_space<vmem>>, vector<32x128xbf16>
    %cst = arith.constant dense<0.000000e+00> : vector<64x128xf32>
    %3 = tpu.matmul %1, %2, %cst {dimension_numbers = #tpu.dot_dimension_numbers<[1], [0], [0], [1], [0, 0, 1, 1], [], []>} : vector<64x32xbf16>, vector<32x128xbf16>, vector<64x128xf32> -> vector<64x128xf32>
    %c0_3 = arith.constant 0 : index
    %c0_4 = arith.constant 0 : index
    %4 = vector.load %arg3[%c0_3, %c0_4] : memref<1x128xf32, #tpu.memory_space<vmem>>, vector<1x128xf32>
    %5 = vector.broadcast %4 : vector<1x128xf32> to vector<64x128xf32>
    %6 = arith.addf %3, %5 : vector<64x128xf32>
    %cst_5 = arith.constant 0.000000e+00 : f32
    %7 = vector.broadcast %cst_5 : f32 to vector<64x128xf32>
    %8 = arith.maximumf %6, %7 : vector<64x128xf32>
    %9 = arith.truncf %8 : vector<64x128xf32> to vector<64x128xbf16>
    %c0_6 = arith.constant 0 : index
    %c0_7 = arith.constant 0 : index
    %10 = vector.load %arg4[%c0_6, %c0_7] : memref<128x128xbf16, #tpu.memory_space<vmem>>, vector<128x128xbf16>
    %cst_8 = arith.constant dense<0.000000e+00> : vector<64x128xf32>
    %11 = tpu.matmul %9, %10, %cst_8 {dimension_numbers = #tpu.dot_dimension_numbers<[1], [0], [0], [1], [0, 0, 1, 1], [], []>} : vector<64x128xbf16>, vector<128x128xbf16>, vector<64x128xf32> -> vector<64x128xf32>
    %c0_9 = arith.constant 0 : index
    %c0_10 = arith.constant 0 : index
    %12 = vector.load %arg5[%c0_9, %c0_10] : memref<1x128xf32, #tpu.memory_space<vmem>>, vector<1x128xf32>
    %13 = vector.broadcast %12 : vector<1x128xf32> to vector<64x128xf32>
    %14 = arith.addf %11, %13 : vector<64x128xf32>
    %cst_11 = arith.constant 0.000000e+00 : f32
    %15 = vector.broadcast %cst_11 : f32 to vector<64x128xf32>
    %16 = arith.maximumf %14, %15 : vector<64x128xf32>
    %17 = arith.truncf %16 : vector<64x128xf32> to vector<64x128xbf16>
    %c0_12 = arith.constant 0 : index
    %c0_13 = arith.constant 0 : index
    %18 = vector.load %arg6[%c0_12, %c0_13] : memref<128x128xbf16, #tpu.memory_space<vmem>>, vector<128x128xbf16>
    %cst_14 = arith.constant dense<0.000000e+00> : vector<64x128xf32>
    %19 = tpu.matmul %17, %18, %cst_14 {dimension_numbers = #tpu.dot_dimension_numbers<[1], [0], [0], [1], [0, 0, 1, 1], [], []>} : vector<64x128xbf16>, vector<128x128xbf16>, vector<64x128xf32> -> vector<64x128xf32>
    %20 = vector.extract_strided_slice %19 {offsets = [0, 0], sizes = [64, 2], strides = [1, 1]} : vector<64x128xf32> to vector<64x2xf32>
    %c0_15 = arith.constant 0 : index
    %c0_16 = arith.constant 0 : index
    %21 = vector.load %arg7[%c0_15, %c0_16] : memref<1x2xf32, #tpu.memory_space<vmem>>, vector<1x2xf32>
    %22 = vector.broadcast %21 : vector<1x2xf32> to vector<64x2xf32>
    %23 = arith.addf %20, %22 : vector<64x2xf32>
    %c0_17 = arith.constant 0 : index
    %c0_18 = arith.constant 0 : index
    %24 = vector.load %arg8[%c0_17, %c0_18] : memref<64x2xf32, #tpu.memory_space<vmem>>, vector<64x2xf32>
    tpu.vector_store %arg8[%c0_17, %c0_18], %23 {strides = array<i32>} : memref<64x2xf32, #tpu.memory_space<vmem>>, vector<64x2xf32>,
    return
  }
  func.func @transform_0(%arg0: i32) -> (i32, i32) {
    %c0_i32 = arith.constant 0 : i32
    %c0_i32_0 = arith.constant 0 : i32
    return %arg0, %c0_i32 : i32, i32
  }
  func.func @transform_1(%arg0: i32) -> (i32, i32) {
    %c0_i32 = arith.constant 0 : i32
    %c0_i32_0 = arith.constant 0 : i32
    %c0_i32_1 = arith.constant 0 : i32
    return %c0_i32, %c0_i32_0 : i32, i32
  }
  func.func @transform_2(%arg0: i32) -> (i32, i32) {
    %c0_i32 = arith.constant 0 : i32
    %c0_i32_0 = arith.constant 0 : i32
    %c0_i32_1 = arith.constant 0 : i32
    return %c0_i32, %c0_i32_0 : i32, i32
  }
  func.func @transform_3(%arg0: i32) -> (i32, i32) {
    %c0_i32 = arith.constant 0 : i32
    %c0_i32_0 = arith.constant 0 : i32
    %c0_i32_1 = arith.constant 0 : i32
    return %c0_i32, %c0_i32_0 : i32, i32
  }
  func.func @transform_4(%arg0: i32) -> (i32, i32) {
    %c0_i32 = arith.constant 0 : i32
    %c0_i32_0 = arith.constant 0 : i32
    %c0_i32_1 = arith.constant 0 : i32
    return %c0_i32, %c0_i32_0 : i32, i32
  }
  func.func @transform_5(%arg0: i32) -> (i32, i32) {
    %c0_i32 = arith.constant 0 : i32
    %c0_i32_0 = arith.constant 0 : i32
    %c0_i32_1 = arith.constant 0 : i32
    return %c0_i32, %c0_i32_0 : i32, i32
  }
  func.func @transform_6(%arg0: i32) -> (i32, i32) {
    %c0_i32 = arith.constant 0 : i32
    %c0_i32_0 = arith.constant 0 : i32
    %c0_i32_1 = arith.constant 0 : i32
    return %c0_i32, %c0_i32_0 : i32, i32
  }
  func.func @transform_7(%arg0: i32) -> (i32, i32) {
    %c0_i32 = arith.constant 0 : i32
    %c0_i32_0 = arith.constant 0 : i32
    return %arg0, %c0_i32 : i32, i32
  }
}

</mosaic_0001>

<llo_original>
// kernel: tpu_custom_call.1
$region0: #{tpu_custom_call.1}
  #allocation0 [shape = 'u32[]', space=smem, size = 0x4, offset = 0x4, fixed_abs, tag = 'smem constant byte address 0x4 - core index']
  #allocation1 [shape = 'u32[72,128]{1,0:T(1,128)}', space=vmem, size = 0x9000, scoped, tag = 'internal scratch']
  %s0 = inlined_call_operand.vmem [shape: f32[200,32], index: 0, kind: input, shape index: {}]
  %s1 = inlined_call_operand.vmem [shape: bf16[32,128], index: 1, kind: input, shape index: {}]
  %s2 = inlined_call_operand.vmem [shape: f32[1,128], index: 2, kind: input, shape index: {}]
  %s3 = inlined_call_operand.vmem [shape: bf16[128,128], index: 3, kind: input, shape index: {}]
  %s4 = inlined_call_operand.vmem [shape: f32[1,128], index: 4, kind: input, shape index: {}]
  %s5 = inlined_call_operand.vmem [shape: bf16[128,128], index: 5, kind: input, shape index: {}]
  %s6 = inlined_call_operand.vmem [shape: f32[1,2], index: 6, kind: input, shape index: {}]
  %s7 = inlined_call_operand.vmem [shape: f32[200,2], index: 7, kind: output, shape index: {}]
  %s8 = sld [smem:[#allocation0]]
  $region109: #{tpu_custom_call.1} parent=0
    _
  %s10 = ssub.s32 1, %s8
  %s11 = scalar_select 0, %s10, %s8
  $region1: #{tpu_custom_call.1} parent=0
    #allocation2 [shape = 'u8[65536]{0}', space=vmem, size = 0x10000, scoped, tag = 'output window, operand 0']
    loop: start=0, step=1, limit=6
    $region2: #{tpu_custom_call.1} parent=1 // loop_pre_header
      _
    $region3: #{tpu_custom_call.1} parent=1 // loop_header
      %s13 = sphi 0, %s17
      %p14 = scmp.ge.s32.totalorder %s13, 6
      %s23 = sphi 0, %s25
      %s26 = sphi 0, %s23
      %s27 = sphi 0, %s26
      %s43 = sphi 0, %s27
      %s47 = sphi 0, %s47
      %s49 = sphi 0, %s47
      %s50 = sphi 0, %s49
      %s64 = sphi 0, %s50
      %s68 = sphi 0, %s68
      %s70 = sphi 0, %s68
      %s71 = sphi 0, %s70
      %s85 = sphi 0, %s71
      %s89 = sphi 0, %s89
      %s91 = sphi 0, %s89
      %s92 = sphi 0, %s91
      %s106 = sphi 0, %s92
      %s110 = sphi 0, %s110
      %s112 = sphi 0, %s110
      %s113 = sphi 0, %s112
      %s127 = sphi 0, %s113
      %s131 = sphi 0, %s131
      %s133 = sphi 0, %s131
      %s134 = sphi 0, %s133
      %s148 = sphi 0, %s134
      %s152 = sphi 0, %s152
      %s154 = sphi 0, %s152
      %s155 = sphi 0, %s154
      %s169 = sphi 0, %s155
      %s175 = sphi 0, %s177
      %s178 = sphi 0, %s175
      %s179 = sphi 0, %s178
      %s195 = sphi 0, %s179
    $region4: #{tpu_custom_call.1} parent=1 // loop_header_branch
      %16 = sbr.rel (%p14) target = $region8
    $region5: #{tpu_custom_call.1} parent=1 // loop_body
      %s18 = ssub.s32 %s13, 1
      %s19 = ssub.s32 %s13, 2
      %s20 = sadd.s32 %s13, 1
      %s21 = ssub.s32 %s13, %s20
      %p22 = scmp.eq.s32.totalorder %s21, 0
      %s24 = sadd.s32 %s23, 1
      %s25 = scalar_select %p22, %s23, %s24
      %p28 = pneg %p22
      %p29 = scmp.eq.s32.totalorder %s13, 3
      %p30 = por %p28, %p29
      %p31 = scmp.ne.s32.totalorder %s23, %s26
      %p32 = scmp.eq.s32.totalorder %s13, 0
      %p33 = por %p31, %p32
      %p34 = scmp.ne.s32.totalorder %s23, %s26
      %p35 = scmp.eq.s32.totalorder %s18, 3
      %p36 = por %p34, %p35
      %p37 = scmp.ne.s32.totalorder %s26, %s27
      %p38 = scmp.eq.s32.totalorder %s18, 0
      %p39 = por %p37, %p38
      %p40 = scmp.ne.s32.totalorder %s26, %s27
      %p41 = scmp.eq.s32.totalorder %s19, 3
      %p42 = por %p40, %p41
      %p44 = scmp.ne.s32.totalorder %s27, %s43
      %p45 = scmp.eq.s32.totalorder %s19, 0
      %p46 = por %p44, %p45
      %s48 = sadd.s32 %s47, 1
      %p51 = scmp.eq.s32.totalorder %s13, 3
      %p52 = scmp.ne.s32.totalorder %s47, %s49
      %p53 = scmp.eq.s32.totalorder %s13, 0
      %p54 = por %p52, %p53
      %p55 = scmp.ne.s32.totalorder %s47, %s49
      %p56 = scmp.eq.s32.totalorder %s18, 3
      %p57 = por %p55, %p56
      %p58 = scmp.ne.s32.totalorder %s49, %s50
      %p59 = scmp.eq.s32.totalorder %s18, 0
      %p60 = por %p58, %p59
      %p61 = scmp.ne.s32.totalorder %s49, %s50
      %p62 = scmp.eq.s32.totalorder %s19, 3
      %p63 = por %p61, %p62
      %p65 = scmp.ne.s32.totalorder %s50, %s64
      %p66 = scmp.eq.s32.totalorder %s19, 0
      %p67 = por %p65, %p66
      %s69 = sadd.s32 %s68, 1
      %p72 = scmp.eq.s32.totalorder %s13, 3
      %p73 = scmp.ne.s32.totalorder %s68, %s70
      %p74 = scmp.eq.s32.totalorder %s13, 0
      %p75 = por %p73, %p74
      %p76 = scmp.ne.s32.totalorder %s68, %s70
      %p77 = scmp.eq.s32.totalorder %s18, 3
      %p78 = por %p76, %p77
      %p79 = scmp.ne.s32.totalorder %s70, %s71
      %p80 = scmp.eq.s32.totalorder %s18, 0
      %p81 = por %p79, %p80
      %p82 = scmp.ne.s32.totalorder %s70, %s71
      %p83 = scmp.eq.s32.totalorder %s19, 3
      %p84 = por %p82, %p83
      %p86 = scmp.ne.s32.totalorder %s71, %s85
      %p87 = scmp.eq.s32.totalorder %s19, 0
      %p88 = por %p86, %p87
      %s90 = sadd.s32 %s89, 1
      %p93 = scmp.eq.s32.totalorder %s13, 3
      %p94 = scmp.ne.s32.totalorder %s89, %s91
      %p95 = scmp.eq.s32.totalorder %s13, 0
      %p96 = por %p94, %p95
      %p97 = scmp.ne.s32.totalorder %s89, %s91
      %p98 = scmp.eq.s32.totalorder %s18, 3
      %p99 = por %p97, %p98
      %p100 = scmp.ne.s32.totalorder %s91, %s92
      %p101 = scmp.eq.s32.totalorder %s18, 0
      %p102 = por %p100, %p101
      %p103 = scmp.ne.s32.totalorder %s91, %s92
      %p104 = scmp.eq.s32.totalorder %s19, 3
      %p105 = por %p103, %p104
      %p107 = scmp.ne.s32.totalorder %s92, %s106
      %p108 = scmp.eq.s32.totalorder %s19, 0
      %p109 = por %p107, %p108
      %s111 = sadd.s32 %s110, 1
      %p114 = scmp.eq.s32.totalorder %s13, 3
      %p115 = scmp.ne.s32.totalorder %s110, %s112
      %p116 = scmp.eq.s32.totalorder %s13, 0
      %p117 = por %p115, %p116
      %p118 = scmp.ne.s32.totalorder %s110, %s112
      %p119 = scmp.eq.s32.totalorder %s18, 3
      %p120 = por %p118, %p119
      %p121 = scmp.ne.s32.totalorder %s112, %s113
      %p122 = scmp.eq.s32.totalorder %s18, 0
      %p123 = por %p121, %p122
      %p124 = scmp.ne.s32.totalorder %s112, %s113
      %p125 = scmp.eq.s32.totalorder %s19, 3
      %p126 = por %p124, %p125
      %p128 = scmp.ne.s32.totalorder %s113, %s127
      %p129 = scmp.eq.s32.totalorder %s19, 0
      %p130 = por %p128, %p129
      %s132 = sadd.s32 %s131, 1
      %p135 = scmp.eq.s32.totalorder %s13, 3
      %p136 = scmp.ne.s32.totalorder %s131, %s133
      %p137 = scmp.eq.s32.totalorder %s13, 0
      %p138 = por %p136, %p137
      %p139 = scmp.ne.s32.totalorder %s131, %s133
      %p140 = scmp.eq.s32.totalorder %s18, 3
      %p141 = por %p139, %p140
      %p142 = scmp.ne.s32.totalorder %s133, %s134
      %p143 = scmp.eq.s32.totalorder %s18, 0
      %p144 = por %p142, %p143
      %p145 = scmp.ne.s32.totalorder %s133, %s134
      %p146 = scmp.eq.s32.totalorder %s19, 3
      %p147 = por %p145, %p146
      %p149 = scmp.ne.s32.totalorder %s134, %s148
      %p150 = scmp.eq.s32.totalorder %s19, 0
      %p151 = por %p149, %p150
      %s153 = sadd.s32 %s152, 1
      %p156 = scmp.eq.s32.totalorder %s13, 3
      %p157 = scmp.ne.s32.totalorder %s152, %s154
      %p158 = scmp.eq.s32.totalorder %s13, 0
      %p159 = por %p157, %p158
      %p160 = scmp.ne.s32.totalorder %s152, %s154
      %p161 = scmp.eq.s32.totalorder %s18, 3
      %p162 = por %p160, %p161
      %p163 = scmp.ne.s32.totalorder %s154, %s155
      %p164 = scmp.eq.s32.totalorder %s18, 0
      %p165 = por %p163, %p164
      %p166 = scmp.ne.s32.totalorder %s154, %s155
      %p167 = scmp.eq.s32.totalorder %s19, 3
      %p168 = por %p166, %p167
      %p170 = scmp.ne.s32.totalorder %s155, %s169
      %p171 = scmp.eq.s32.totalorder %s19, 0
      %p172 = por %p170, %p171
      %s173 = ssub.s32 %s13, %s20
      %p174 = scmp.eq.s32.totalorder %s173, 0
      %s176 = sadd.s32 %s175, 1
      %s177 = scalar_select %p174, %s175, %s176
      %p180 = pneg %p174
      %p181 = scmp.eq.s32.totalorder %s13, 3
      %p182 = por %p180, %p181
      %p183 = scmp.ne.s32.totalorder %s175, %s178
      %p184 = scmp.eq.s32.totalorder %s13, 0
      %p185 = por %p183, %p184
      %p186 = scmp.ne.s32.totalorder %s175, %s178
      %p187 = scmp.eq.s32.totalorder %s18, 3
      %p188 = por %p186, %p187
      %p189 = scmp.ne.s32.totalorder %s178, %s179
      %p190 = scmp.eq.s32.totalorder %s18, 0
      %p191 = por %p189, %p190
      %p192 = scmp.ne.s32.totalorder %s178, %s179
      %p193 = scmp.eq.s32.totalorder %s19, 3
      %p194 = por %p192, %p193
      %p196 = scmp.ne.s32.totalorder %s179, %s195
      %p197 = scmp.eq.s32.totalorder %s19, 0
      %p198 = por %p196, %p197
      %p199 = scmp.le.s32.totalorder 1, %s13
      %p200 = scmp.lt.s32.totalorder %s13, 5
      %p201 = pnand %p199, %p200
      %p202 = pneg %p201
      // Predicated region
      $region9: #{tpu_custom_call.1} parent=5 // pred_check
        _
      $region10: #{tpu_custom_call.1} parent=5 // pred_check_branch
        %204 = sbr.rel (%p201) target = $region12
      $region11: #{tpu_custom_call.1} parent=5 // pred_region
        %s205 = ssub.s32 %s13, 1
        // Predicated region
        $region13: #{tpu_custom_call.1} parent=11 // pred_check
          %p206 = pneg %p60
        $region14: #{tpu_custom_call.1} parent=11 // pred_check_branch
          %208 = sbr.rel (%p206) target = $region16
        $region15: #{tpu_custom_call.1} parent=11 // pred_region
          _
        $region16: #{tpu_custom_call.1} parent=11 // pred_fallthru
          _
        // Predicated region
        $region17: #{tpu_custom_call.1} parent=11 // pred_check
          %p209 = pneg %p81
        $region18: #{tpu_custom_call.1} parent=11 // pred_check_branch
          %211 = sbr.rel (%p209) target = $region20
        $region19: #{tpu_custom_call.1} parent=11 // pred_region
          _
        $region20: #{tpu_custom_call.1} parent=11 // pred_fallthru
          _
        // Predicated region
        $region21: #{tpu_custom_call.1} parent=11 // pred_check
          %p212 = pneg %p102
        $region22: #{tpu_custom_call.1} parent=11 // pred_check_branch
          %214 = sbr.rel (%p212) target = $region24
        $region23: #{tpu_custom_call.1} parent=11 // pred_region
          _
        $region24: #{tpu_custom_call.1} parent=11 // pred_fallthru
          _
        // Predicated region
        $region25: #{tpu_custom_call.1} parent=11 // pred_check
          %p215 = pneg %p123
        $region26: #{tpu_custom_call.1} parent=11 // pred_check_branch
          %217 = sbr.rel (%p215) target = $region28
        $region27: #{tpu_custom_call.1} parent=11 // pred_region
          _
        $region28: #{tpu_custom_call.1} parent=11 // pred_fallthru
          _
        // Predicated region
        $region29: #{tpu_custom_call.1} parent=11 // pred_check
          %p218 = pneg %p144
        $region30: #{tpu_custom_call.1} parent=11 // pred_check_branch
          %220 = sbr.rel (%p218) target = $region32
        $region31: #{tpu_custom_call.1} parent=11 // pred_region
          _
        $region32: #{tpu_custom_call.1} parent=11 // pred_fallthru
          _
        // Predicated region
        $region33: #{tpu_custom_call.1} parent=11 // pred_check
          %p221 = pneg %p165
        $region34: #{tpu_custom_call.1} parent=11 // pred_check_branch
          %223 = sbr.rel (%p221) target = $region36
        $region35: #{tpu_custom_call.1} parent=11 // pred_region
          _
        $region36: #{tpu_custom_call.1} parent=11 // pred_fallthru
          _
      $region12: #{tpu_custom_call.1} parent=5 // pred_fallthru
        _
      %p224 = scmp.lt.s32.totalorder %s13, 4
      // Predicated region
      $region37: #{tpu_custom_call.1} parent=5 // pred_check
        %p225 = pneg %p224
      $region38: #{tpu_custom_call.1} parent=5 // pred_check_branch
        %227 = sbr.rel (%p225) target = $region40
      $region39: #{tpu_custom_call.1} parent=5 // pred_region
        // Predicated region
        $region41: #{tpu_custom_call.1} parent=39 // pred_check
          %p228 = pneg %p33
        $region42: #{tpu_custom_call.1} parent=39 // pred_check_branch
          %230 = sbr.rel (%p228) target = $region44
        $region43: #{tpu_custom_call.1} parent=39 // pred_region
          %s231 = smul.u32 8, %s13
          %s232 = ssub.s32 25, %s231
          %p233 = scmp.lt.s32.totalorder %s232, 8
          %s234 = scalar_select %p233, %s232, 8
          %s235 = smul.u32 8, %s234
          %p236 = scmp.lt.s32.totalorder %s231, 24
          %s237 = scalar_select %p236, %s231, 24
          %s238 = smul.addr %s237, 8
          %s239 = scalar_lea.vmem %s0, %s238
          %s240 = smul.u32 8, %s13
          %s241 = ssub.s32 25, %s240
          %p242 = scmp.lt.s32.totalorder %s241, 8
          %s243 = scalar_select %p242, %s241, 8
          %s244 = smul.u32 8, %s243
        $region44: #{tpu_custom_call.1} parent=39 // pred_fallthru
          _
      $region40: #{tpu_custom_call.1} parent=5 // pred_fallthru
        _
      %p245 = scmp.le.s32.totalorder 1, %s13
      %p246 = scmp.lt.s32.totalorder %s13, 5
      %p247 = pnand %p245, %p246
      %p248 = pneg %p247
      // Predicated region
      $region45: #{tpu_custom_call.1} parent=5 // pred_check
        _
      $region46: #{tpu_custom_call.1} parent=5 // pred_check_branch
        %250 = sbr.rel (%p247) target = $region48
      $region47: #{tpu_custom_call.1} parent=5 // pred_region
        %s251 = ssub.s32 %s13, 1
        %s252 = smul.u32 8, %s18
        %s253 = ssub.s32 25, %s252
        %p254 = scmp.lt.s32.totalorder %s253, 8
        %s255 = scalar_select %p254, %s253, 8
        %s256 = smul.u32 8, %s255
        %p257 = scmp.lt.s32.totalorder %s252, 24
        %s258 = scalar_select %p257, %s252, 24
        %s259 = smul.addr %s258, 8
        %s260 = scalar_lea.vmem %s0, %s259
        %p261 = pneg %p39
        %p262 = pneg %p36
        %p263 = pneg %p60
        %p264 = pneg %p57
        %p265 = pneg %p81
        %p266 = pneg %p78
        %p267 = pneg %p102
        %p268 = pneg %p99
        %p269 = pneg %p123
        %p270 = pneg %p120
        %p271 = pneg %p144
        %p272 = pneg %p141
        %p273 = pneg %p165
        %p274 = pneg %p162
        %p275 = pneg %p191
        %p276 = pneg %p188
        %s277 = sand.u32 %s178, 1
        %s278 = sand.u32 %s178, 1
        %s279 = smul.addr %s278, 64
        %s280 = scalar_lea.vmem [#allocation2], %s279
        %s281 = smul.u32 8, %s18
        %s282 = ssub.s32 25, %s281
        %p283 = scmp.lt.s32.totalorder %s282, 8
        %s284 = scalar_select %p283, %s282, 8
        %s285 = smul.u32 8, %s284
        %p286 = scmp.lt.s32.totalorder %s281, 24
        %s287 = scalar_select %p286, %s281, 24
        %s288 = smul.addr %s287, 8
        %s289 = scalar_lea.vmem %s0, %s288
        %s290 = smul.u32 8, %s18
        %s291 = ssub.s32 25, %s290
        %p292 = scmp.lt.s32.totalorder %s291, 8
        %s293 = scalar_select %p292, %s291, 8
        %s294 = smul.u32 8, %s293
        %s295 = smul.u32 8, %s18
        %s296 = ssub.s32 25, %s295
        %p297 = scmp.lt.s32.totalorder %s296, 8
        %s298 = scalar_select %p297, %s296, 8
        %s299 = smul.u32 8, %s298
        %v301 = vld [vmem:[%s289] sm:$0xff]
        %v302 = vld [vmem:[%s289 + $0x8] sm:$0xff]
        %v303 = vld [vmem:[%s289 + $0x10] sm:$0xff]
        %v304 = vld [vmem:[%s289 + $0x18] sm:$0xff]
        %v305 = vld [vmem:[%s289 + $0x20] sm:$0xff]
        %v306 = vld [vmem:[%s289 + $0x28] sm:$0xff]
        %v307 = vld [vmem:[%s289 + $0x30] sm:$0xff]
        %v308 = vld [vmem:[%s289 + $0x38] sm:$0xff]
        %v309 = vpack.c.bf16 %v302, %v301
        %v310 = vpack.c.bf16 %v304, %v303
        %v311 = vpack.c.bf16 %v306, %v305
        %v312 = vpack.c.bf16 %v308, %v307
        %v313 = vld [vmem:[%s1] sm:$0xf]
        %v314 = vld [vmem:[%s1 + $0x4] sm:$0xf]
        %v315 = vld [vmem:[%s1 + $0x8] sm:$0xf]
        %v316 = vld [vmem:[%s1 + $0xc] sm:$0xf]
        %v317 = vld [vmem:[%s2] sm:$0x1]
        %v319 = vperm.slane %v317, 0
        %v325 = vunpack.c.l.b16 %v313
        %v326 = vunpack.c.l.b16 %v314
        %v327 = vunpack.c.l.b16 %v315
        %v328 = vunpack.c.l.b16 %v316
        %v329 = vpack.c.b16 %v326, %v325
        %v330 = vpack.c.b16 %v328, %v327
        %vm333 = vcmask 261120
        %v335 = vsel %vm333, %v309, 0
        %v338 = vsel %vm333, %v310, 0
        %v341 = vsel %vm333, %v311, 0
        %v344 = vsel %vm333, %v312, 0
        %346 = vmatpush.bf16.msra.mxu0 0
        %347 = vmatpush.bf16.msra.mxu0 0
        %348 = vmatpush.bf16.msra.mxu0 0
        %349 = vmatpush.bf16.msra.mxu0 0
        %350 = vmatpush.bf16.msra.mxu0 0
        %351 = vmatpush.bf16.msra.mxu0 0
        %352 = vmatpush.bf16.msra.mxu0 %v330
        %353 = vmatpush.bf16.msra.mxu0 %v329
        %354 = vmatmul.bf16.gmra.mxu0 %v335
        %v355 = vpop.f32.mrf.mxu0
        %v356 = vadd.f32 %v319, %v355
        %v357 = vpop.f32.mrf.mxu0
        %v358 = vadd.f32 %v319, %v357
        %359 = vmatmul.bf16.gmra.mxu0 %v338
        %v360 = vpop.f32.mrf.mxu0
        %v361 = vadd.f32 %v319, %v360
        %v362 = vpop.f32.mrf.mxu0
        %v363 = vadd.f32 %v319, %v362
        %364 = vmatmul.bf16.gmra.mxu0 %v341
        %v365 = vpop.f32.mrf.mxu0
        %v366 = vadd.f32 %v319, %v365
        %v367 = vpop.f32.mrf.mxu0
        %v368 = vadd.f32 %v319, %v367
        %369 = vmatmul.bf16.gmra.mxu0 %v344
        %v370 = vpop.f32.mrf.mxu0
        %v371 = vadd.f32 %v319, %v370
        %v372 = vpop.f32.mrf.mxu0
        %v373 = vadd.f32 %v319, %v372
        %374 = vdwg.mxu0
        %v375 = vmax.f32 %v356, 0.0
        %v376 = vmax.f32 %v358, 0.0
        %v377 = vmax.f32 %v361, 0.0
        %v378 = vmax.f32 %v363, 0.0
        %v379 = vmax.f32 %v366, 0.0
        %v380 = vmax.f32 %v368, 0.0
        %v381 = vmax.f32 %v371, 0.0
        %v382 = vmax.f32 %v373, 0.0
        %v383 = vpack.c.bf16 %v376, %v375
        %v384 = vpack.c.bf16 %v378, %v377
        %v385 = vpack.c.bf16 %v380, %v379
        %v386 = vpack.c.bf16 %v382, %v381
        %v387 = vld [vmem:[%s3] sm:$0xf]
        %v388 = vld [vmem:[%s3 + $0x4] sm:$0xf]
        %v389 = vld [vmem:[%s3 + $0x8] sm:$0xf]
        %v390 = vld [vmem:[%s3 + $0xc] sm:$0xf]
        %v391 = vld [vmem:[%s3 + $0x10] sm:$0xf]
        %v392 = vld [vmem:[%s3 + $0x14] sm:$0xf]
        %v393 = vld [vmem:[%s3 + $0x18] sm:$0xf]
        %v394 = vld [vmem:[%s3 + $0x1c] sm:$0xf]
        %v395 = vld [vmem:[%s3 + $0x20] sm:$0xf]
        %v396 = vld [vmem:[%s3 + $0x24] sm:$0xf]
        %v397 = vld [vmem:[%s3 + $0x28] sm:$0xf]
        %v398 = vld [vmem:[%s3 + $0x2c] sm:$0xf]
        %v399 = vld [vmem:[%s3 + $0x30] sm:$0xf]
        %v400 = vld [vmem:[%s3 + $0x34] sm:$0xf]
        %v401 = vld [vmem:[%s3 + $0x38] sm:$0xf]
        %v402 = vld [vmem:[%s3 + $0x3c] sm:$0xf]
        %v403 = vld [vmem:[%s4] sm:$0x1]
        %v405 = vperm.slane %v403, 0
        %v423 = vunpack.c.l.b16 %v387
        %v424 = vunpack.c.l.b16 %v388
        %v425 = vunpack.c.l.b16 %v389
        %v426 = vunpack.c.l.b16 %v390
        %v427 = vunpack.c.l.b16 %v391
        %v428 = vunpack.c.l.b16 %v392
        %v429 = vunpack.c.l.b16 %v393
        %v430 = vunpack.c.l.b16 %v394
        %v431 = vunpack.c.l.b16 %v395
        %v432 = vunpack.c.l.b16 %v396
        %v433 = vunpack.c.l.b16 %v397
        %v434 = vunpack.c.l.b16 %v398
        %v435 = vunpack.c.l.b16 %v399
        %v436 = vunpack.c.l.b16 %v400
        %v437 = vunpack.c.l.b16 %v401
        %v438 = vunpack.c.l.b16 %v402
        %v439 = vpack.c.b16 %v424, %v423
        %v440 = vpack.c.b16 %v426, %v425
        %v441 = vpack.c.b16 %v428, %v427
        %v442 = vpack.c.b16 %v430, %v429
        %v443 = vpack.c.b16 %v432, %v431
        %v444 = vpack.c.b16 %v434, %v433
        %v445 = vpack.c.b16 %v436, %v435
        %v446 = vpack.c.b16 %v438, %v437
        %455 = vmatpush.bf16.msra.mxu0 %v446
        %456 = vmatpush.bf16.msra.mxu0 %v445
        %457 = vmatpush.bf16.msra.mxu0 %v444
        %458 = vmatpush.bf16.msra.mxu0 %v443
        %459 = vmatpush.bf16.msra.mxu0 %v442
        %460 = vmatpush.bf16.msra.mxu0 %v441
        %461 = vmatpush.bf16.msra.mxu0 %v440
        %462 = vmatpush.bf16.msra.mxu0 %v439
        %463 = vmatmul.bf16.gmra.mxu0 %v383
        %v464 = vpop.f32.mrf.mxu0
        %v465 = vadd.f32 %v405, %v464
        %v466 = vpop.f32.mrf.mxu0
        %v467 = vadd.f32 %v405, %v466
        %468 = vmatmul.bf16.gmra.mxu0 %v384
        %v469 = vpop.f32.mrf.mxu0
        %v470 = vadd.f32 %v405, %v469
        %v471 = vpop.f32.mrf.mxu0
        %v472 = vadd.f32 %v405, %v471
        %473 = vmatmul.bf16.gmra.mxu0 %v385
        %v474 = vpop.f32.mrf.mxu0
        %v475 = vadd.f32 %v405, %v474
        %v476 = vpop.f32.mrf.mxu0
        %v477 = vadd.f32 %v405, %v476
        %478 = vmatmul.bf16.gmra.mxu0 %v386
        %v479 = vpop.f32.mrf.mxu0
        %v480 = vadd.f32 %v405, %v479
        %v481 = vpop.f32.mrf.mxu0
        %v482 = vadd.f32 %v405, %v481
        %483 = vdwg.mxu0
        %v484 = vmax.f32 %v465, 0.0
        %v485 = vmax.f32 %v467, 0.0
        %v486 = vmax.f32 %v470, 0.0
        %v487 = vmax.f32 %v472, 0.0
        %v488 = vmax.f32 %v475, 0.0
        %v489 = vmax.f32 %v477, 0.0
        %v490 = vmax.f32 %v480, 0.0
        %v491 = vmax.f32 %v482, 0.0
        %v492 = vpack.c.bf16 %v485, %v484
        %v493 = vpack.c.bf16 %v487, %v486
        %v494 = vpack.c.bf16 %v489, %v488
        %v495 = vpack.c.bf16 %v491, %v490
        %v496 = vld [vmem:[%s5] sm:$0xf]
        %v497 = vld [vmem:[%s5 + $0x4] sm:$0xf]
        %v498 = vld [vmem:[%s5 + $0x8] sm:$0xf]
        %v499 = vld [vmem:[%s5 + $0xc] sm:$0xf]
        %v500 = vld [vmem:[%s5 + $0x10] sm:$0xf]
        %v501 = vld [vmem:[%s5 + $0x14] sm:$0xf]
        %v502 = vld [vmem:[%s5 + $0x18] sm:$0xf]
        %v503 = vld [vmem:[%s5 + $0x1c] sm:$0xf]
        %v504 = vld [vmem:[%s5 + $0x20] sm:$0xf]
        %v505 = vld [vmem:[%s5 + $0x24] sm:$0xf]
        %v506 = vld [vmem:[%s5 + $0x28] sm:$0xf]
        %v507 = vld [vmem:[%s5 + $0x2c] sm:$0xf]
        %v508 = vld [vmem:[%s5 + $0x30] sm:$0xf]
        %v509 = vld [vmem:[%s5 + $0x34] sm:$0xf]
        %v510 = vld [vmem:[%s5 + $0x38] sm:$0xf]
        %v511 = vld [vmem:[%s5 + $0x3c] sm:$0xf]
        %v528 = vunpack.c.l.b16 %v496
        %v529 = vunpack.c.l.b16 %v497
        %v530 = vunpack.c.l.b16 %v498
        %v531 = vunpack.c.l.b16 %v499
        %v532 = vunpack.c.l.b16 %v500
        %v533 = vunpack.c.l.b16 %v501
        %v534 = vunpack.c.l.b16 %v502
        %v535 = vunpack.c.l.b16 %v503
        %v536 = vunpack.c.l.b16 %v504
        %v537 = vunpack.c.l.b16 %v505
        %v538 = vunpack.c.l.b16 %v506
        %v539 = vunpack.c.l.b16 %v507
        %v540 = vunpack.c.l.b16 %v508
        %v541 = vunpack.c.l.b16 %v509
        %v542 = vunpack.c.l.b16 %v510
        %v543 = vunpack.c.l.b16 %v511
        %v544 = vpack.c.b16 %v529, %v528
        %v545 = vpack.c.b16 %v531, %v530
        %v546 = vpack.c.b16 %v533, %v532
        %v547 = vpack.c.b16 %v535, %v534
        %v548 = vpack.c.b16 %v537, %v536
        %v549 = vpack.c.b16 %v539, %v538
        %v550 = vpack.c.b16 %v541, %v540
        %v551 = vpack.c.b16 %v543, %v542
        %560 = vmatpush.bf16.msra.mxu0 %v551
        %561 = vmatpush.bf16.msra.mxu0 %v550
        %562 = vmatpush.bf16.msra.mxu0 %v549
        %563 = vmatpush.bf16.msra.mxu0 %v548
        %564 = vmatpush.bf16.msra.mxu0 %v547
        %565 = vmatpush.bf16.msra.mxu0 %v546
        %566 = vmatpush.bf16.msra.mxu0 %v545
        %567 = vmatpush.bf16.msra.mxu0 %v544
        %568 = vmatmul.bf16.gmra.mxu0 %v492
        %v569 = vpop.f32.mrf.mxu0
        %v570 = vadd.f32 0.0, %v569
        %v571 = vpop.f32.mrf.mxu0
        %v572 = vadd.f32 0.0, %v571
        %573 = vmatmul.bf16.gmra.mxu0 %v493
        %v574 = vpop.f32.mrf.mxu0
        %v575 = vadd.f32 0.0, %v574
        %v576 = vpop.f32.mrf.mxu0
        %v577 = vadd.f32 0.0, %v576
        %578 = vmatmul.bf16.gmra.mxu0 %v494
        %v579 = vpop.f32.mrf.mxu0
        %v580 = vadd.f32 0.0, %v579
        %v581 = vpop.f32.mrf.mxu0
        %v582 = vadd.f32 0.0, %v581
        %583 = vmatmul.bf16.gmra.mxu0 %v495
        %v584 = vpop.f32.mrf.mxu0
        %v585 = vadd.f32 0.0, %v584
        %v586 = vpop.f32.mrf.mxu0
        %v587 = vadd.f32 0.0, %v586
        %588 = vdwg.mxu0
        %v589 = vld [vmem:[%s6] sm:$0x1]
        %v591 = vperm.slane %v589, 0
        %v593 = vadd.f32 %v570, %v591
        %v594 = vadd.f32 %v572, %v591
        %v595 = vadd.f32 %v575, %v591
        %v596 = vadd.f32 %v577, %v591
        %v597 = vadd.f32 %v580, %v591
        %v598 = vadd.f32 %v582, %v591
        %v599 = vadd.f32 %v585, %v591
        %v600 = vadd.f32 %v587, %v591
        %vm601 = vcmask 15360
        %602 = vst.msk [vmem:[%s280] sm:$0xff] %vm601, %v593
        %603 = vst.msk [vmem:[%s280 + $0x8] sm:$0xff] %vm601, %v594
        %604 = vst.msk [vmem:[%s280 + $0x10] sm:$0xff] %vm601, %v595
        %605 = vst.msk [vmem:[%s280 + $0x18] sm:$0xff] %vm601, %v596
        %606 = vst.msk [vmem:[%s280 + $0x20] sm:$0xff] %vm601, %v597
        %607 = vst.msk [vmem:[%s280 + $0x28] sm:$0xff] %vm601, %v598
        %608 = vst.msk [vmem:[%s280 + $0x30] sm:$0xff] %vm601, %v599
        %609 = vst.msk [vmem:[%s280 + $0x38] sm:$0xff] %vm601, %v600
        %s610 = sand.u32 %s178, 1
        %s611 = sand.u32 %s178, 1
        %s612 = smul.addr %s611, 64
        %s613 = scalar_lea.vmem [#allocation2], %s612
        // Predicated region
        $region49: #{tpu_custom_call.1} parent=47 // pred_check
          %p614 = pneg %p188
        $region50: #{tpu_custom_call.1} parent=47 // pred_check_branch
          %616 = sbr.rel (%p614) target = $region52
        $region51: #{tpu_custom_call.1} parent=47 // pred_region
          %s617 = smul.u32 8, %s18
          %s618 = ssub.s32 25, %s617
          %p619 = scmp.lt.s32.totalorder %s618, 8
          %s620 = scalar_select %p619, %s618, 8
          %s621 = smul.u32 8, %s620
          %p622 = scmp.ne.s32.totalorder 0, %s621
          %s623 = smul.addr %s617, 8
          %s624 = scalar_lea.vmem %s7, %s623
          // Predicated region
          $region53: #{tpu_custom_call.1} parent=51 // pred_check
            %p625 = pneg %p622
          $region54: #{tpu_custom_call.1} parent=51 // pred_check_branch
            %627 = sbr.rel (%p625) target = $region56
          $region55: #{tpu_custom_call.1} parent=51 // pred_region
            // Predicated region
            $region57: #{tpu_custom_call.1} parent=55 // pred_check
              _
            $region58: #{tpu_custom_call.1} parent=55 // pred_check_branch
              %629 = sbr.rel (0) target = $region60
            $region59: #{tpu_custom_call.1} parent=55 // pred_region
              // Predicated region
              $region79: #{tpu_custom_call.1} parent=59 // pred_check
                _
              $region80: #{tpu_custom_call.1} parent=59 // pred_check_branch
                %693 = sbr.rel (0) target = $region82
              $region81: #{tpu_custom_call.1} parent=59 // pred_region
                %s694 = sshrl.u32 %s620, 3
                // While loop
                $region83: #{tpu_custom_call.1} parent=81 // loop_pre_header
                  _
                $region84: #{tpu_custom_call.1} parent=81 // loop_header
                  %s696 = sphi 0, %s698
                  %p697 = scmp.ge.s32.totalorder %s696, %s694
                  %s701 = sphi 0, %s722
                  %s702 = sphi %s613, %s725
                  %s703 = sphi %s624, %s726
                $region85: #{tpu_custom_call.1} parent=81 // loop_header_branch
                  %700 = sbr.rel (%p697) target = $region89
                $region86: #{tpu_custom_call.1} parent=81 // loop_body
                  %v704 = vld [vmem:[%s702] sm:$0xff]
                  %705 = vst [vmem:[%s703] sm:$0xff] %v704
                  %v706 = vld [vmem:[%s702 + $0x8] sm:$0xff]
                  %707 = vst [vmem:[%s703 + $0x8] sm:$0xff] %v706
                  %v708 = vld [vmem:[%s702 + $0x10] sm:$0xff]
                  %709 = vst [vmem:[%s703 + $0x10] sm:$0xff] %v708
                  %v710 = vld [vmem:[%s702 + $0x18] sm:$0xff]
                  %711 = vst [vmem:[%s703 + $0x18] sm:$0xff] %v710
                  %v712 = vld [vmem:[%s702 + $0x20] sm:$0xff]
                  %713 = vst [vmem:[%s703 + $0x20] sm:$0xff] %v712
                  %v714 = vld [vmem:[%s702 + $0x28] sm:$0xff]
                  %715 = vst [vmem:[%s703 + $0x28] sm:$0xff] %v714
                  %v716 = vld [vmem:[%s702 + $0x30] sm:$0xff]
                  %717 = vst [vmem:[%s703 + $0x30] sm:$0xff] %v716
                  %v718 = vld [vmem:[%s702 + $0x38] sm:$0xff]
                  %719 = vst [vmem:[%s703 + $0x38] sm:$0xff] %v718
                  %s720 = sadd.s32 1, %s701
                  %p721 = scmp.ge.s32.totalorder %s720, %s694
                  %s722 = scalar_select %p721, 0, %s720
                  %s723 = smul.u32 %s722, 64
                  %s724 = smul.u32 %s722, 64
                  %s725 = scalar_lea.vmem %s613, %s723 [#allocation2]
                  %s726 = scalar_lea.vmem %s624, %s724
                $region87: #{tpu_custom_call.1} parent=81 // loop_footer
                  %s698 = sadd.s32 %s696, 1
                $region88: #{tpu_custom_call.1} parent=81 // loop_footer_branch
                  %695 = sbr.rel target = $region84
                $region89: #{tpu_custom_call.1} parent=81 // loop_exit
                  _
                %s727 = sshrl.u32 %s620, 3
                %s728 = sand.u32 %s620, 7
                %s729 = smul.u32 %s727, 8
                %s730 = smul.u32 8, %s729
                %s731 = scalar_lea.vmem %s613, %s730 [#allocation2]
                %s732 = smul.u32 8, %s729
                %s733 = scalar_lea.vmem %s624, %s732
                // While loop
                $region90: #{tpu_custom_call.1} parent=81 // loop_pre_header
                  _
                $region91: #{tpu_custom_call.1} parent=81 // loop_header
                  %s735 = sphi 0, %s737
                  %p736 = scmp.ge.s32.totalorder %s735, %s728
                  %s740 = sphi 0, %s747
                  %s741 = sphi %s731, %s750
                  %s742 = sphi %s733, %s751
                $region92: #{tpu_custom_call.1} parent=81 // loop_header_branch
                  %739 = sbr.rel (%p736) target = $region96
                $region93: #{tpu_custom_call.1} parent=81 // loop_body
                  %v743 = vld [vmem:[%s741] sm:$0xff]
                  %744 = vst [vmem:[%s742] sm:$0xff] %v743
                  %s745 = sadd.s32 1, %s740
                  %p746 = scmp.ge.s32.totalorder %s745, %s728
                  %s747 = scalar_select %p746, 0, %s745
                  %s748 = smul.u32 %s747, 8
                  %s749 = smul.u32 %s747, 8
                  %s750 = scalar_lea.vmem %s731, %s748 [#allocation2]
                  %s751 = scalar_lea.vmem %s733, %s749
                $region94: #{tpu_custom_call.1} parent=81 // loop_footer
                  %s737 = sadd.s32 %s735, 1
                $region95: #{tpu_custom_call.1} parent=81 // loop_footer_branch
                  %734 = sbr.rel target = $region91
                $region96: #{tpu_custom_call.1} parent=81 // loop_exit
                  _
              $region82: #{tpu_custom_call.1} parent=59 // pred_fallthru
                _
              // Predicated region
              $region97: #{tpu_custom_call.1} parent=59 // pred_check
                _
              $region98: #{tpu_custom_call.1} parent=59 // pred_check_branch
                %753 = sbr.rel target = $region100
              $region99: #{tpu_custom_call.1} parent=59 // pred_region
                _
              $region100: #{tpu_custom_call.1} parent=59 // pred_fallthru
                _
            $region60: #{tpu_custom_call.1} parent=55 // pred_fallthru
              _
            // Predicated region
            $region61: #{tpu_custom_call.1} parent=55 // pred_check
              _
            $region62: #{tpu_custom_call.1} parent=55 // pred_check_branch
              %631 = sbr.rel target = $region64
            $region63: #{tpu_custom_call.1} parent=55 // pred_region
              %s633 = ssub.s32 256, 1
              %s634 = sshrl.u32 %s620, 3
              // While loop
              $region65: #{tpu_custom_call.1} parent=63 // loop_pre_header
                _
              $region66: #{tpu_custom_call.1} parent=63 // loop_header
                %s636 = sphi 0, %s638
                %p637 = scmp.ge.s32.totalorder %s636, %s634
                %s641 = sphi 0, %s662
                %s642 = sphi %s613, %s665
                %s643 = sphi %s624, %s666
              $region67: #{tpu_custom_call.1} parent=63 // loop_header_branch
                %640 = sbr.rel (%p637) target = $region71
              $region68: #{tpu_custom_call.1} parent=63 // loop_body
                %v644 = vld [vmem:[%s642] sm:%s633]
                %645 = vst [vmem:[%s643] sm:%s633] %v644
                %v646 = vld [vmem:[%s642 + $0x8] sm:%s633]
                %647 = vst [vmem:[%s643 + $0x8] sm:%s633] %v646
                %v648 = vld [vmem:[%s642 + $0x10] sm:%s633]
                %649 = vst [vmem:[%s643 + $0x10] sm:%s633] %v648
                %v650 = vld [vmem:[%s642 + $0x18] sm:%s633]
                %651 = vst [vmem:[%s643 + $0x18] sm:%s633] %v650
                %v652 = vld [vmem:[%s642 + $0x20] sm:%s633]
                %653 = vst [vmem:[%s643 + $0x20] sm:%s633] %v652
                %v654 = vld [vmem:[%s642 + $0x28] sm:%s633]
                %655 = vst [vmem:[%s643 + $0x28] sm:%s633] %v654
                %v656 = vld [vmem:[%s642 + $0x30] sm:%s633]
                %657 = vst [vmem:[%s643 + $0x30] sm:%s633] %v656
                %v658 = vld [vmem:[%s642 + $0x38] sm:%s633]
                %659 = vst [vmem:[%s643 + $0x38] sm:%s633] %v658
                %s660 = sadd.s32 1, %s641
                %p661 = scmp.ge.s32.totalorder %s660, %s634
                %s662 = scalar_select %p661, 0, %s660
                %s663 = smul.u32 %s662, 64
                %s664 = smul.u32 %s662, 64
                %s665 = scalar_lea.vmem %s613, %s663 [#allocation2]
                %s666 = scalar_lea.vmem %s624, %s664
              $region69: #{tpu_custom_call.1} parent=63 // loop_footer
                %s638 = sadd.s32 %s636, 1
              $region70: #{tpu_custom_call.1} parent=63 // loop_footer_branch
                %635 = sbr.rel target = $region66
              $region71: #{tpu_custom_call.1} parent=63 // loop_exit
                _
              %s667 = sshrl.u32 %s620, 3
              %s668 = sand.u32 %s620, 7
              %s669 = smul.u32 %s667, 8
              %s670 = smul.u32 8, %s669
              %s671 = scalar_lea.vmem %s613, %s670 [#allocation2]
              %s672 = smul.u32 8, %s669
              %s673 = scalar_lea.vmem %s624, %s672
              // While loop
              $region72: #{tpu_custom_call.1} parent=63 // loop_pre_header
                _
              $region73: #{tpu_custom_call.1} parent=63 // loop_header
                %s675 = sphi 0, %s677
                %p676 = scmp.ge.s32.totalorder %s675, %s668
                %s680 = sphi 0, %s687
                %s681 = sphi %s671, %s690
                %s682 = sphi %s673, %s691
              $region74: #{tpu_custom_call.1} parent=63 // loop_header_branch
                %679 = sbr.rel (%p676) target = $region78
              $region75: #{tpu_custom_call.1} parent=63 // loop_body
                %v683 = vld [vmem:[%s681] sm:%s633]
                %684 = vst [vmem:[%s682] sm:%s633] %v683
                %s685 = sadd.s32 1, %s680
                %p686 = scmp.ge.s32.totalorder %s685, %s668
                %s687 = scalar_select %p686, 0, %s685
                %s688 = smul.u32 %s687, 8
                %s689 = smul.u32 %s687, 8
                %s690 = scalar_lea.vmem %s671, %s688 [#allocation2]
                %s691 = scalar_lea.vmem %s673, %s689
              $region76: #{tpu_custom_call.1} parent=63 // loop_footer
                %s677 = sadd.s32 %s675, 1
              $region77: #{tpu_custom_call.1} parent=63 // loop_footer_branch
                %674 = sbr.rel target = $region73
              $region78: #{tpu_custom_call.1} parent=63 // loop_exit
                _
            $region64: #{tpu_custom_call.1} parent=55 // pred_fallthru
              _
          $region56: #{tpu_custom_call.1} parent=51 // pred_fallthru
            _
          %754 = vnop
        $region52: #{tpu_custom_call.1} parent=47 // pred_fallthru
          _
      $region48: #{tpu_custom_call.1} parent=5 // pred_fallthru
        _
      %p755 = scmp.le.s32.totalorder 2, %s13
      // Predicated region
      $region101: #{tpu_custom_call.1} parent=5 // pred_check
        %p756 = pneg %p755
      $region102: #{tpu_custom_call.1} parent=5 // pred_check_branch
        %758 = sbr.rel (%p756) target = $region104
      $region103: #{tpu_custom_call.1} parent=5 // pred_region
        %s759 = ssub.s32 %s13, 2
        // Predicated region
        $region105: #{tpu_custom_call.1} parent=103 // pred_check
          %p760 = pneg %p194
        $region106: #{tpu_custom_call.1} parent=103 // pred_check_branch
          %762 = sbr.rel (%p760) target = $region108
        $region107: #{tpu_custom_call.1} parent=103 // pred_region
          %s763 = sand.u32 %s179, 1
          %s764 = sand.u32 %s179, 1
          %s765 = smul.addr %s764, 64
          %s766 = scalar_lea.vmem [#allocation2], %s765
        $region108: #{tpu_custom_call.1} parent=103 // pred_fallthru
          _
      $region104: #{tpu_custom_call.1} parent=5 // pred_fallthru
        _
    $region6: #{tpu_custom_call.1} parent=1 // loop_footer
      %s17 = sadd.s32 1, %s13
    $region7: #{tpu_custom_call.1} parent=1 // loop_footer_branch
      %12 = sbr.rel target = $region3
    $region8: #{tpu_custom_call.1} parent=1 // loop_exit
      _

</llo_original>
